<compile_context>
chip_gen: v6e
topology: v6e:2x2x1
jax: 0.10.0
libtpu: 0.0.40
codegen_flags: <defaults>
</compile_context>

<pallas_src>
import functools

import jax
import jax.numpy as jnp
from jax.experimental import pallas as pl
from jax.experimental.pallas import tpu as pltpu

H1 = 128          # fc1 output width
H2 = 32           # fc2 logical output width
H2_PAD = 128      # fc2 padded to a full lane width
NCLS_PAD = 128    # class dim padded to a full lane width (lane-dense stores)


def mlp_kernel(x_ref, w1_ref, b1_ref, w2_ref, b2_ref, w3_ref, b3_ref, o_ref,
               *, use_bf16_exp):
    # fc1 + ReLU: cast f32 activations to bf16 in-kernel (cheap VPU op that
    # hides under the MXU); accumulate in f32.
    x = x_ref[...].astype(jnp.bfloat16)                          # [TB, n_in]
    h1 = jnp.dot(x, w1_ref[...], preferred_element_type=jnp.float32)
    h1 = jnp.maximum(h1 + b1_ref[...], 0.0)                      # [TB, 128] f32
    # dropout (eval mode) -> identity

    # fc2 + ReLU (w2/b2 zero-padded 32 -> 128; padded lanes stay exactly 0)
    h2 = jnp.dot(h1.astype(jnp.bfloat16), w2_ref[...],
                 preferred_element_type=jnp.float32)
    h2 = jnp.maximum(h2 + b2_ref[...], 0.0)                      # [TB, 128] f32
    # dropout (eval mode) -> identity

    # fc3 + softmax.  b3 carries -1e30 in the padded class columns, so the
    # existing bias add doubles as the class mask (exp underflows to exactly 0).
    logits = jnp.dot(h2.astype(jnp.bfloat16), w3_ref[...],
                     preferred_element_type=jnp.float32) + b3_ref[...]
    m = jnp.max(logits, axis=-1, keepdims=True)
    z = logits - m
    if use_bf16_exp:
        # v6e/v7x only: EUP has a bf16 path (~2x exp throughput); the row sum
        # and the normalization stay in f32.
        e = jnp.exp(z.astype(jnp.bfloat16)).astype(jnp.float32)
    else:
        e = jnp.exp(z)
    denom = jnp.sum(e, axis=-1, keepdims=True)
    probs = e / denom                 # exact normalization: rows sum to 1 (f32)
    o_ref[...] = probs.astype(o_ref.dtype)                       # [TB, 128] bf16


def _default_bf16_exp():
    """Enable the bf16 exp path only on chips with a bf16 EUP (v6e / v7x)."""
    try:
        kind = jax.devices()[0].device_kind.lower()
    except Exception:
        return False
    return ("v6" in kind) or ("v7" in kind)


def _choose_tiling(B, tb_max=2048):
    """Pick (TB, B_pad): TB a multiple of 8, TB <= tb_max, at least 2 grid
    steps whenever possible (v7x megacore), and minimal batch-padding waste."""
    B8 = max(8, pl.cdiv(B, 8) * 8)
    if B8 <= 8:
        return 8, 8
    n_tiles = max(2, pl.cdiv(B8, tb_max))
    TB = pl.cdiv(pl.cdiv(B8, n_tiles), 8) * 8
    B_pad = pl.cdiv(B8, TB) * TB
    return TB, B_pad


def simple_mlp_forward(x, kparams, n_classes, *, tb_max=2048, use_bf16_exp=None):
    """x: [B, n_in] float32 (any batch). kparams: padded/bf16 kernel params."""
    B, n_in = x.shape
    if use_bf16_exp is None:
        use_bf16_exp = _default_bf16_exp()

    TB, B_pad = _choose_tiling(B, tb_max)
    if B_pad != B:
        x = jnp.pad(x, ((0, B_pad - B), (0, 0)))   # rows only; dtype stays f32
    grid = (B_pad // TB,)

    def resident(shape):
        # weights/biases: same block every grid step -> stay pinned in VMEM
        return pl.BlockSpec(shape, lambda i: (0, 0))

    flops = 2 * B_pad * (n_in * H1 + H1 * H2_PAD + H2_PAD * NCLS_PAD)
    bytes_accessed = (B_pad * n_in * 4 + B_pad * NCLS_PAD * 2
                      + sum(int(v.size) * v.dtype.itemsize
                            for v in kparams.values()))
    cost = pl.CostEstimate(flops=flops,
                           transcendentals=B_pad * NCLS_PAD,
                           bytes_accessed=bytes_accessed)

    out = pl.pallas_call(
        functools.partial(mlp_kernel, use_bf16_exp=use_bf16_exp),
        out_shape=jax.ShapeDtypeStruct((B_pad, NCLS_PAD), jnp.bfloat16),
        grid=grid,
        in_specs=[
            pl.BlockSpec((TB, n_in), lambda i: (i, 0)),   # activations: pipelined (f32)
            resident((n_in, H1)),
            resident((1, H1)),
            resident((H1, H2_PAD)),
            resident((1, H2_PAD)),
            resident((H2_PAD, NCLS_PAD)),
            resident((1, NCLS_PAD)),
        ],
        out_specs=pl.BlockSpec((TB, NCLS_PAD), lambda i: (i, 0)),
        compiler_params=pltpu.CompilerParams(dimension_semantics=("parallel",)),
        cost_estimate=cost,
    )(x, kparams["w1"], kparams["b1"], kparams["w2"], kparams["b2"],
      kparams["w3"], kparams["b3"])

    # tiny [B, n_classes] slice; cast back to f32 to match the PyTorch module.
    return out[:B, :n_classes].astype(jnp.float32)


def init_params(key, n_in, n_classes=10):
    """Logical f32 params mimicking PyTorch Linear init (uniform +/- 1/sqrt(fan_in)).
    Weights stored as [in, out] (transposed vs. PyTorch's [out, in])."""
    def linear_init(k, fan_in, fan_out):
        kw, kb = jax.random.split(k)
        bound = 1.0 / jnp.sqrt(jnp.float32(fan_in))
        w = jax.random.uniform(kw, (fan_in, fan_out), jnp.float32, -bound, bound)
        b = jax.random.uniform(kb, (fan_out,), jnp.float32, -bound, bound)
        return w, b

    k1, k2, k3 = jax.random.split(key, 3)
    w1, b1 = linear_init(k1, n_in, H1)
    w2, b2 = linear_init(k2, H1, H2)
    w3, b3 = linear_init(k3, H2, n_classes)
    return {"w1": w1, "b1": b1, "w2": w2, "b2": b2, "w3": w3, "b3": b3}


def pad_and_cast_params(p, n_classes):
    """Pad fc2/fc3 to 128 lanes, cast weights to bf16 (biases stay f32), and
    bake the padded-class mask into b3 (-1e30 columns >= n_classes)."""
    def pad2(a, rows, cols):
        return jnp.pad(a, ((0, rows - a.shape[0]), (0, cols - a.shape[1])))

    w1 = p["w1"].astype(jnp.bfloat16)
    w2 = pad2(p["w2"], H1, H2_PAD).astype(jnp.bfloat16)
    w3 = pad2(p["w3"], H2_PAD, NCLS_PAD).astype(jnp.bfloat16)
    b1 = p["b1"].reshape(1, H1).astype(jnp.float32)
    b2 = jnp.pad(p["b2"], (0, H2_PAD - H2)).reshape(1, H2_PAD).astype(jnp.float32)
    b3 = jnp.full((NCLS_PAD,), -1e30, jnp.float32)
    b3 = b3.at[:n_classes].set(p["b3"].astype(jnp.float32)).reshape(1, NCLS_PAD)
    return {"w1": w1, "b1": b1, "w2": w2, "b2": b2, "w3": w3, "b3": b3}


def reference_forward(x, p):
    """Pure-JAX f32 reference (eval-mode dropout = identity)."""
    h1 = jax.nn.relu(x @ p["w1"] + p["b1"])
    h2 = jax.nn.relu(h1 @ p["w2"] + p["b2"])
    return jax.nn.softmax(h2 @ p["w3"] + p["b3"], axis=1)


if __name__ == "__main__":
    key = jax.random.PRNGKey(0)
    k_x, k_p = jax.random.split(key)

    B, n_in, n_classes = 16, 64, 10
    x = jax.random.normal(k_x, (B, n_in), dtype=jnp.float32)
    params = init_params(k_p, n_in, n_classes)
    kparams = pad_and_cast_params(params, n_classes)

    out = simple_mlp_forward(x, kparams, n_classes)
    out = jax.block_until_ready(out)

    # sanity: shape, softmax rows sum to ~1 (exact normalization in-kernel,
    # only bf16 output rounding remains), and match the f32 reference.
    assert out.shape == (B, n_classes)
    assert jnp.allclose(jnp.sum(out, axis=1), 1.0, atol=5e-3)
    ref = reference_forward(x, params)
    max_err = float(jnp.max(jnp.abs(out - ref)))
    assert max_err < 2e-2, max_err

    print("KERNEL_OK")
</pallas_src>

<mosaic_0001>
module attributes {stable_mosaic.version = 11 : i64} {
  func.func @mlp_kernel(%arg0: i32, %arg1: memref<8x64xf32, #tpu.memory_space<vmem>>, %arg2: memref<64x128xbf16, #tpu.memory_space<vmem>>, %arg3: memref<1x128xf32, #tpu.memory_space<vmem>>, %arg4: memref<128x128xbf16, #tpu.memory_space<vmem>>, %arg5: memref<1x128xf32, #tpu.memory_space<vmem>>, %arg6: memref<128x128xbf16, #tpu.memory_space<vmem>>, %arg7: memref<1x128xf32, #tpu.memory_space<vmem>>, %arg8: memref<8x128xbf16, #tpu.memory_space<vmem>>) attributes {dimension_semantics = [#tpu.dimension_semantics<parallel>], iteration_bounds = array<i64: 2>, scalar_prefetch = 0 : i64, scratch_operands = 0 : i64, tpu.core_type = #tpu.core_type<tc>, window_params = [{transform_indices = @transform_0, window_bounds = array<i64: 8, 64>}, {pipeline_mode = #tpu.pipeline_mode<synchronous>, transform_indices = @transform_1, window_bounds = array<i64: 64, 128>}, {pipeline_mode = #tpu.pipeline_mode<synchronous>, transform_indices = @transform_2, window_bounds = array<i64: 1, 128>}, {pipeline_mode = #tpu.pipeline_mode<synchronous>, transform_indices = @transform_3, window_bounds = array<i64: 128, 128>}, {pipeline_mode = #tpu.pipeline_mode<synchronous>, transform_indices = @transform_4, window_bounds = array<i64: 1, 128>}, {pipeline_mode = #tpu.pipeline_mode<synchronous>, transform_indices = @transform_5, window_bounds = array<i64: 128, 128>}, {pipeline_mode = #tpu.pipeline_mode<synchronous>, transform_indices = @transform_6, window_bounds = array<i64: 1, 128>}, {transform_indices = @transform_7, window_bounds = array<i64: 8, 128>}]} {
    %c0 = arith.constant 0 : index
    %c0_0 = arith.constant 0 : index
    %0 = vector.load %arg1[%c0, %c0_0] : memref<8x64xf32, #tpu.memory_space<vmem>>, vector<8x64xf32>
    %1 = arith.truncf %0 : vector<8x64xf32> to vector<8x64xbf16>
    %c0_1 = arith.constant 0 : index
    %c0_2 = arith.constant 0 : index
    %2 = vector.load %arg2[%c0_1, %c0_2] : memref<64x128xbf16, #tpu.memory_space<vmem>>, vector<64x128xbf16>
    %cst = arith.constant dense<0.000000e+00> : vector<8x128xf32>
    %3 = tpu.matmul %1, %2, %cst {dimension_numbers = #tpu.dot_dimension_numbers<[1], [0], [0], [1], [0, 0, 1, 1], [], []>} : vector<8x64xbf16>, vector<64x128xbf16>, vector<8x128xf32> -> vector<8x128xf32>
    %c0_3 = arith.constant 0 : index
    %c0_4 = arith.constant 0 : index
    %4 = vector.load %arg3[%c0_3, %c0_4] : memref<1x128xf32, #tpu.memory_space<vmem>>, vector<1x128xf32>
    %5 = vector.broadcast %4 : vector<1x128xf32> to vector<8x128xf32>
    %6 = arith.addf %3, %5 : vector<8x128xf32>
    %cst_5 = arith.constant 0.000000e+00 : f32
    %7 = vector.broadcast %cst_5 : f32 to vector<8x128xf32>
    %8 = arith.maximumf %6, %7 : vector<8x128xf32>
    %9 = arith.truncf %8 : vector<8x128xf32> to vector<8x128xbf16>
    %c0_6 = arith.constant 0 : index
    %c0_7 = arith.constant 0 : index
    %10 = vector.load %arg4[%c0_6, %c0_7] : memref<128x128xbf16, #tpu.memory_space<vmem>>, vector<128x128xbf16>
    %cst_8 = arith.constant dense<0.000000e+00> : vector<8x128xf32>
    %11 = tpu.matmul %9, %10, %cst_8 {dimension_numbers = #tpu.dot_dimension_numbers<[1], [0], [0], [1], [0, 0, 1, 1], [], []>} : vector<8x128xbf16>, vector<128x128xbf16>, vector<8x128xf32> -> vector<8x128xf32>
    %c0_9 = arith.constant 0 : index
    %c0_10 = arith.constant 0 : index
    %12 = vector.load %arg5[%c0_9, %c0_10] : memref<1x128xf32, #tpu.memory_space<vmem>>, vector<1x128xf32>
    %13 = vector.broadcast %12 : vector<1x128xf32> to vector<8x128xf32>
    %14 = arith.addf %11, %13 : vector<8x128xf32>
    %cst_11 = arith.constant 0.000000e+00 : f32
    %15 = vector.broadcast %cst_11 : f32 to vector<8x128xf32>
    %16 = arith.maximumf %14, %15 : vector<8x128xf32>
    %17 = arith.truncf %16 : vector<8x128xf32> to vector<8x128xbf16>
    %c0_12 = arith.constant 0 : index
    %c0_13 = arith.constant 0 : index
    %18 = vector.load %arg6[%c0_12, %c0_13] : memref<128x128xbf16, #tpu.memory_space<vmem>>, vector<128x128xbf16>
    %cst_14 = arith.constant dense<0.000000e+00> : vector<8x128xf32>
    %19 = tpu.matmul %17, %18, %cst_14 {dimension_numbers = #tpu.dot_dimension_numbers<[1], [0], [0], [1], [0, 0, 1, 1], [], []>} : vector<8x128xbf16>, vector<128x128xbf16>, vector<8x128xf32> -> vector<8x128xf32>
    %c0_15 = arith.constant 0 : index
    %c0_16 = arith.constant 0 : index
    %20 = vector.load %arg7[%c0_15, %c0_16] : memref<1x128xf32, #tpu.memory_space<vmem>>, vector<1x128xf32>
    %21 = vector.broadcast %20 : vector<1x128xf32> to vector<8x128xf32>
    %22 = arith.addf %19, %21 : vector<8x128xf32>
    %cst_17 = arith.constant dense<0xFF800000> : vector<8xf32>
    %23 = vector.multi_reduction <maximumf>, %22, %cst_17 [1] : vector<8x128xf32> to vector<8xf32>
    %24 = vector.shape_cast %23 : vector<8xf32> to vector<8x1xf32>
    %25 = vector.broadcast %24 : vector<8x1xf32> to vector<8x128xf32>
    %26 = arith.subf %22, %25 : vector<8x128xf32>
    %27 = math.exp %26 : vector<8x128xf32>
    %cst_18 = arith.constant dense<0.000000e+00> : vector<8xf32>
    %28 = vector.multi_reduction <add>, %27, %cst_18 [1] : vector<8x128xf32> to vector<8xf32>
    %29 = vector.shape_cast %28 : vector<8xf32> to vector<8x1xf32>
    %30 = vector.broadcast %29 : vector<8x1xf32> to vector<8x128xf32>
    %31 = arith.divf %27, %30 : vector<8x128xf32>
    %32 = arith.truncf %31 : vector<8x128xf32> to vector<8x128xbf16>
    %c0_19 = arith.constant 0 : index
    %c0_20 = arith.constant 0 : index
    %33 = vector.load %arg8[%c0_19, %c0_20] : memref<8x128xbf16, #tpu.memory_space<vmem>>, vector<8x128xbf16>
    tpu.vector_store %arg8[%c0_19, %c0_20], %32 {strides = array<i32>} : memref<8x128xbf16, #tpu.memory_space<vmem>>, vector<8x128xbf16>,
    return
  }
  func.func @transform_0(%arg0: i32) -> (i32, i32) {
    %c0_i32 = arith.constant 0 : i32
    %c0_i32_0 = arith.constant 0 : i32
    return %arg0, %c0_i32 : i32, i32
  }
  func.func @transform_1(%arg0: i32) -> (i32, i32) {
    %c0_i32 = arith.constant 0 : i32
    %c0_i32_0 = arith.constant 0 : i32
    %c0_i32_1 = arith.constant 0 : i32
    return %c0_i32, %c0_i32_0 : i32, i32
  }
  func.func @transform_2(%arg0: i32) -> (i32, i32) {
    %c0_i32 = arith.constant 0 : i32
    %c0_i32_0 = arith.constant 0 : i32
    %c0_i32_1 = arith.constant 0 : i32
    return %c0_i32, %c0_i32_0 : i32, i32
  }
  func.func @transform_3(%arg0: i32) -> (i32, i32) {
    %c0_i32 = arith.constant 0 : i32
    %c0_i32_0 = arith.constant 0 : i32
    %c0_i32_1 = arith.constant 0 : i32
    return %c0_i32, %c0_i32_0 : i32, i32
  }
  func.func @transform_4(%arg0: i32) -> (i32, i32) {
    %c0_i32 = arith.constant 0 : i32
    %c0_i32_0 = arith.constant 0 : i32
    %c0_i32_1 = arith.constant 0 : i32
    return %c0_i32, %c0_i32_0 : i32, i32
  }
  func.func @transform_5(%arg0: i32) -> (i32, i32) {
    %c0_i32 = arith.constant 0 : i32
    %c0_i32_0 = arith.constant 0 : i32
    %c0_i32_1 = arith.constant 0 : i32
    return %c0_i32, %c0_i32_0 : i32, i32
  }
  func.func @transform_6(%arg0: i32) -> (i32, i32) {
    %c0_i32 = arith.constant 0 : i32
    %c0_i32_0 = arith.constant 0 : i32
    %c0_i32_1 = arith.constant 0 : i32
    return %c0_i32, %c0_i32_0 : i32, i32
  }
  func.func @transform_7(%arg0: i32) -> (i32, i32) {
    %c0_i32 = arith.constant 0 : i32
    %c0_i32_0 = arith.constant 0 : i32
    return %arg0, %c0_i32 : i32, i32
  }
}

</mosaic_0001>

<llo_original>
// kernel: tpu_custom_call.1
$region0: #{tpu_custom_call.1}
  #allocation0 [shape = 'u32[]', space=smem, size = 0x4, offset = 0x4, fixed_abs, tag = 'smem constant byte address 0x4 - core index']
  #allocation1 [shape = 'u32[144,128]{1,0:T(1,128)}', space=vmem, size = 0x12000, scoped, tag = 'internal scratch']
  %s0 = inlined_call_operand.hbm [shape: f32[16,64], index: 0, kind: input, shape index: {}]
  %s1 = inlined_call_operand.hbm [shape: bf16[64,128], index: 1, kind: input, shape index: {}]
  %s2 = inlined_call_operand.vmem [shape: f32[1,128], index: 2, kind: input, shape index: {}]
  %s3 = inlined_call_operand.hbm [shape: bf16[128,128], index: 3, kind: input, shape index: {}]
  %s4 = inlined_call_operand.vmem [shape: f32[1,128], index: 4, kind: input, shape index: {}]
  %s5 = inlined_call_operand.hbm [shape: bf16[128,128], index: 5, kind: input, shape index: {}]
  %s6 = inlined_call_operand.vmem [shape: f32[1,128], index: 6, kind: input, shape index: {}]
  %s7 = inlined_call_operand.hbm [shape: bf16[16,128], index: 7, kind: output, shape index: {}]
  %s8 = sld [smem:[#allocation0]]
  $region77: #{tpu_custom_call.1} parent=0
    _
  %s10 = ssub.s32 1, %s8
  %s11 = scalar_select 0, %s10, %s8
  $region1: #{tpu_custom_call.1} parent=0
    #allocation2 [shape = 'u8[8192]{0}', space=vmem, size = 0x2000, scoped, tag = 'input window, operand 0']
    #allocation3 [shape = 's32[2]{0}', space=sflag, size = 0x8, scoped, tag = 'scoped memory for tpu_custom_call.1']
    #allocation4 [shape = 's32[2]{0}', space=sflag, size = 0x8, scoped, tag = 'scoped memory for tpu_custom_call.1']
    #allocation5 [shape = 'u8[16384]{0}', space=vmem, size = 0x4000, scoped, tag = 'input window, operand 1, single buffered']
    #allocation6 [shape = 's32[1]{0}', space=sflag, size = 0x4, scoped, tag = 'scoped memory for tpu_custom_call.1']
    #allocation7 [shape = 'u8[32768]{0}', space=vmem, size = 0x8000, scoped, tag = 'input window, operand 3, single buffered']
    #allocation8 [shape = 'u8[32768]{0}', space=vmem, size = 0x8000, scoped, tag = 'input window, operand 5, single buffered']
    #allocation9 [shape = 's32[1]{0}', space=sflag, size = 0x4, scoped, tag = 'scoped memory for tpu_custom_call.1']
    #allocation10 [shape = 'u8[4096]{0}', space=vmem, size = 0x1000, scoped, tag = 'output window, operand 0']
    %12 = vsyncpa [#allocation3], 0
    %s13 = scalar_lea.sflag [#allocation3], 1
    %14 = vsyncpa %s13, 0
    %15 = vsyncpa [#allocation6], 0
    %16 = vsyncpa [#allocation9], 0
    %17 = vsyncpa [#allocation4], 0
    %s18 = scalar_lea.sflag [#allocation4], 1
    %19 = vsyncpa %s18, 0
    loop: start=0, step=1, limit=4
    $region2: #{tpu_custom_call.1} parent=1 // loop_pre_header
      _
    $region3: #{tpu_custom_call.1} parent=1 // loop_header
      %s21 = sphi 0, %s25
      %p22 = scmp.ge.s32.totalorder %s21, 4
      %s31 = sphi 0, %s33
      %s34 = sphi 0, %s31
      %s35 = sphi 0, %s34
      %s51 = sphi 0, %s35
      %s55 = sphi 0, %s55
      %s57 = sphi 0, %s55
      %s58 = sphi 0, %s57
      %s72 = sphi 0, %s58
      %s76 = sphi 0, %s76
      %s78 = sphi 0, %s76
      %s79 = sphi 0, %s78
      %s93 = sphi 0, %s79
      %s97 = sphi 0, %s97
      %s99 = sphi 0, %s97
      %s100 = sphi 0, %s99
      %s114 = sphi 0, %s100
      %s118 = sphi 0, %s118
      %s120 = sphi 0, %s118
      %s121 = sphi 0, %s120
      %s135 = sphi 0, %s121
      %s139 = sphi 0, %s139
      %s141 = sphi 0, %s139
      %s142 = sphi 0, %s141
      %s156 = sphi 0, %s142
      %s160 = sphi 0, %s160
      %s162 = sphi 0, %s160
      %s163 = sphi 0, %s162
      %s177 = sphi 0, %s163
      %s183 = sphi 0, %s185
      %s186 = sphi 0, %s183
      %s187 = sphi 0, %s186
      %s203 = sphi 0, %s187
    $region4: #{tpu_custom_call.1} parent=1 // loop_header_branch
      %24 = sbr.rel (%p22) target = $region8
    $region5: #{tpu_custom_call.1} parent=1 // loop_body
      %s26 = ssub.s32 %s21, 1
      %s27 = ssub.s32 %s21, 2
      %s28 = sadd.s32 %s21, 1
      %s29 = ssub.s32 %s21, %s28
      %p30 = scmp.eq.s32.totalorder %s29, 0
      %s32 = sadd.s32 %s31, 1
      %s33 = scalar_select %p30, %s31, %s32
      %p36 = pneg %p30
      %p37 = scmp.eq.s32.totalorder %s21, 1
      %p38 = por %p36, %p37
      %p39 = scmp.ne.s32.totalorder %s31, %s34
      %p40 = scmp.eq.s32.totalorder %s21, 0
      %p41 = por %p39, %p40
      %p42 = scmp.ne.s32.totalorder %s31, %s34
      %p43 = scmp.eq.s32.totalorder %s26, 1
      %p44 = por %p42, %p43
      %p45 = scmp.ne.s32.totalorder %s34, %s35
      %p46 = scmp.eq.s32.totalorder %s26, 0
      %p47 = por %p45, %p46
      %p48 = scmp.ne.s32.totalorder %s34, %s35
      %p49 = scmp.eq.s32.totalorder %s27, 1
      %p50 = por %p48, %p49
      %p52 = scmp.ne.s32.totalorder %s35, %s51
      %p53 = scmp.eq.s32.totalorder %s27, 0
      %p54 = por %p52, %p53
      %s56 = sadd.s32 %s55, 1
      %p59 = scmp.eq.s32.totalorder %s21, 1
      %p60 = scmp.ne.s32.totalorder %s55, %s57
      %p61 = scmp.eq.s32.totalorder %s21, 0
      %p62 = por %p60, %p61
      %p63 = scmp.ne.s32.totalorder %s55, %s57
      %p64 = scmp.eq.s32.totalorder %s26, 1
      %p65 = por %p63, %p64
      %p66 = scmp.ne.s32.totalorder %s57, %s58
      %p67 = scmp.eq.s32.totalorder %s26, 0
      %p68 = por %p66, %p67
      %p69 = scmp.ne.s32.totalorder %s57, %s58
      %p70 = scmp.eq.s32.totalorder %s27, 1
      %p71 = por %p69, %p70
      %p73 = scmp.ne.s32.totalorder %s58, %s72
      %p74 = scmp.eq.s32.totalorder %s27, 0
      %p75 = por %p73, %p74
      %s77 = sadd.s32 %s76, 1
      %p80 = scmp.eq.s32.totalorder %s21, 1
      %p81 = scmp.ne.s32.totalorder %s76, %s78
      %p82 = scmp.eq.s32.totalorder %s21, 0
      %p83 = por %p81, %p82
      %p84 = scmp.ne.s32.totalorder %s76, %s78
      %p85 = scmp.eq.s32.totalorder %s26, 1
      %p86 = por %p84, %p85
      %p87 = scmp.ne.s32.totalorder %s78, %s79
      %p88 = scmp.eq.s32.totalorder %s26, 0
      %p89 = por %p87, %p88
      %p90 = scmp.ne.s32.totalorder %s78, %s79
      %p91 = scmp.eq.s32.totalorder %s27, 1
      %p92 = por %p90, %p91
      %p94 = scmp.ne.s32.totalorder %s79, %s93
      %p95 = scmp.eq.s32.totalorder %s27, 0
      %p96 = por %p94, %p95
      %s98 = sadd.s32 %s97, 1
      %p101 = scmp.eq.s32.totalorder %s21, 1
      %p102 = scmp.ne.s32.totalorder %s97, %s99
      %p103 = scmp.eq.s32.totalorder %s21, 0
      %p104 = por %p102, %p103
      %p105 = scmp.ne.s32.totalorder %s97, %s99
      %p106 = scmp.eq.s32.totalorder %s26, 1
      %p107 = por %p105, %p106
      %p108 = scmp.ne.s32.totalorder %s99, %s100
      %p109 = scmp.eq.s32.totalorder %s26, 0
      %p110 = por %p108, %p109
      %p111 = scmp.ne.s32.totalorder %s99, %s100
      %p112 = scmp.eq.s32.totalorder %s27, 1
      %p113 = por %p111, %p112
      %p115 = scmp.ne.s32.totalorder %s100, %s114
      %p116 = scmp.eq.s32.totalorder %s27, 0
      %p117 = por %p115, %p116
      %s119 = sadd.s32 %s118, 1
      %p122 = scmp.eq.s32.totalorder %s21, 1
      %p123 = scmp.ne.s32.totalorder %s118, %s120
      %p124 = scmp.eq.s32.totalorder %s21, 0
      %p125 = por %p123, %p124
      %p126 = scmp.ne.s32.totalorder %s118, %s120
      %p127 = scmp.eq.s32.totalorder %s26, 1
      %p128 = por %p126, %p127
      %p129 = scmp.ne.s32.totalorder %s120, %s121
      %p130 = scmp.eq.s32.totalorder %s26, 0
      %p131 = por %p129, %p130
      %p132 = scmp.ne.s32.totalorder %s120, %s121
      %p133 = scmp.eq.s32.totalorder %s27, 1
      %p134 = por %p132, %p133
      %p136 = scmp.ne.s32.totalorder %s121, %s135
      %p137 = scmp.eq.s32.totalorder %s27, 0
      %p138 = por %p136, %p137
      %s140 = sadd.s32 %s139, 1
      %p143 = scmp.eq.s32.totalorder %s21, 1
      %p144 = scmp.ne.s32.totalorder %s139, %s141
      %p145 = scmp.eq.s32.totalorder %s21, 0
      %p146 = por %p144, %p145
      %p147 = scmp.ne.s32.totalorder %s139, %s141
      %p148 = scmp.eq.s32.totalorder %s26, 1
      %p149 = por %p147, %p148
      %p150 = scmp.ne.s32.totalorder %s141, %s142
      %p151 = scmp.eq.s32.totalorder %s26, 0
      %p152 = por %p150, %p151
      %p153 = scmp.ne.s32.totalorder %s141, %s142
      %p154 = scmp.eq.s32.totalorder %s27, 1
      %p155 = por %p153, %p154
      %p157 = scmp.ne.s32.totalorder %s142, %s156
      %p158 = scmp.eq.s32.totalorder %s27, 0
      %p159 = por %p157, %p158
      %s161 = sadd.s32 %s160, 1
      %p164 = scmp.eq.s32.totalorder %s21, 1
      %p165 = scmp.ne.s32.totalorder %s160, %s162
      %p166 = scmp.eq.s32.totalorder %s21, 0
      %p167 = por %p165, %p166
      %p168 = scmp.ne.s32.totalorder %s160, %s162
      %p169 = scmp.eq.s32.totalorder %s26, 1
      %p170 = por %p168, %p169
      %p171 = scmp.ne.s32.totalorder %s162, %s163
      %p172 = scmp.eq.s32.totalorder %s26, 0
      %p173 = por %p171, %p172
      %p174 = scmp.ne.s32.totalorder %s162, %s163
      %p175 = scmp.eq.s32.totalorder %s27, 1
      %p176 = por %p174, %p175
      %p178 = scmp.ne.s32.totalorder %s163, %s177
      %p179 = scmp.eq.s32.totalorder %s27, 0
      %p180 = por %p178, %p179
      %s181 = ssub.s32 %s21, %s28
      %p182 = scmp.eq.s32.totalorder %s181, 0
      %s184 = sadd.s32 %s183, 1
      %s185 = scalar_select %p182, %s183, %s184
      %p188 = pneg %p182
      %p189 = scmp.eq.s32.totalorder %s21, 1
      %p190 = por %p188, %p189
      %p191 = scmp.ne.s32.totalorder %s183, %s186
      %p192 = scmp.eq.s32.totalorder %s21, 0
      %p193 = por %p191, %p192
      %p194 = scmp.ne.s32.totalorder %s183, %s186
      %p195 = scmp.eq.s32.totalorder %s26, 1
      %p196 = por %p194, %p195
      %p197 = scmp.ne.s32.totalorder %s186, %s187
      %p198 = scmp.eq.s32.totalorder %s26, 0
      %p199 = por %p197, %p198
      %p200 = scmp.ne.s32.totalorder %s186, %s187
      %p201 = scmp.eq.s32.totalorder %s27, 1
      %p202 = por %p200, %p201
      %p204 = scmp.ne.s32.totalorder %s187, %s203
      %p205 = scmp.eq.s32.totalorder %s27, 0
      %p206 = por %p204, %p205
      %p207 = scmp.le.s32.totalorder 1, %s21
      %p208 = scmp.lt.s32.totalorder %s21, 3
      %p209 = pnand %p207, %p208
      %p210 = pneg %p209
      // Predicated region
      $region9: #{tpu_custom_call.1} parent=5 // pred_check
        _
      $region10: #{tpu_custom_call.1} parent=5 // pred_check_branch
        %212 = sbr.rel (%p209) target = $region12
      $region11: #{tpu_custom_call.1} parent=5 // pred_region
        %s213 = ssub.s32 %s21, 1
        // Predicated region
        $region13: #{tpu_custom_call.1} parent=11 // pred_check
          %p214 = pneg %p68
        $region14: #{tpu_custom_call.1} parent=11 // pred_check_branch
          %216 = sbr.rel (%p214) target = $region16
        $region15: #{tpu_custom_call.1} parent=11 // pred_region
          %s218 = ssub.s32 512, 512
          %219 = vsyncadd [#allocation6], %s218
          %s220 = sshll.u32 [#allocation5], 4
          %s221 = int_to_ptr.vmem [resolvable:$true] %s220
          %226 = dma.hbm_to_vmem [thread:$0]  %s1, 512, %s221, [#allocation6], 64, 64, 4
        $region16: #{tpu_custom_call.1} parent=11 // pred_fallthru
          _
        // Predicated region
        $region17: #{tpu_custom_call.1} parent=11 // pred_check
          %p227 = pneg %p89
        $region18: #{tpu_custom_call.1} parent=11 // pred_check_branch
          %229 = sbr.rel (%p227) target = $region20
        $region19: #{tpu_custom_call.1} parent=11 // pred_region
          _
        $region20: #{tpu_custom_call.1} parent=11 // pred_fallthru
          _
        // Predicated region
        $region21: #{tpu_custom_call.1} parent=11 // pred_check
          %p230 = pneg %p110
        $region22: #{tpu_custom_call.1} parent=11 // pred_check_branch
          %232 = sbr.rel (%p230) target = $region24
        $region23: #{tpu_custom_call.1} parent=11 // pred_region
          %s234 = ssub.s32 1024, 1024
          %235 = vsyncadd [#allocation6], %s234
          %s236 = sshll.u32 [#allocation7], 4
          %s237 = int_to_ptr.vmem [resolvable:$true] %s236
          %242 = dma.hbm_to_vmem [thread:$0]  %s3, 1024, %s237, [#allocation6], 64, 64, 4
        $region24: #{tpu_custom_call.1} parent=11 // pred_fallthru
          _
        // Predicated region
        $region25: #{tpu_custom_call.1} parent=11 // pred_check
          %p243 = pneg %p131
        $region26: #{tpu_custom_call.1} parent=11 // pred_check_branch
          %245 = sbr.rel (%p243) target = $region28
        $region27: #{tpu_custom_call.1} parent=11 // pred_region
          _
        $region28: #{tpu_custom_call.1} parent=11 // pred_fallthru
          _
        // Predicated region
        $region29: #{tpu_custom_call.1} parent=11 // pred_check
          %p246 = pneg %p152
        $region30: #{tpu_custom_call.1} parent=11 // pred_check_branch
          %248 = sbr.rel (%p246) target = $region32
        $region31: #{tpu_custom_call.1} parent=11 // pred_region
          %s250 = ssub.s32 1024, 1024
          %251 = vsyncadd [#allocation9], %s250
          %s252 = sshll.u32 [#allocation8], 4
          %s253 = int_to_ptr.vmem [resolvable:$true] %s252
          %258 = dma.hbm_to_vmem [thread:$0]  %s5, 1024, %s253, [#allocation9], 64, 64, 4
        $region32: #{tpu_custom_call.1} parent=11 // pred_fallthru
          _
        // Predicated region
        $region33: #{tpu_custom_call.1} parent=11 // pred_check
          %p259 = pneg %p173
        $region34: #{tpu_custom_call.1} parent=11 // pred_check_branch
          %261 = sbr.rel (%p259) target = $region36
        $region35: #{tpu_custom_call.1} parent=11 // pred_region
          _
        $region36: #{tpu_custom_call.1} parent=11 // pred_fallthru
          _
      $region12: #{tpu_custom_call.1} parent=5 // pred_fallthru
        _
      %p262 = scmp.lt.s32.totalorder %s21, 2
      // Predicated region
      $region37: #{tpu_custom_call.1} parent=5 // pred_check
        %p263 = pneg %p262
      $region38: #{tpu_custom_call.1} parent=5 // pred_check_branch
        %265 = sbr.rel (%p263) target = $region40
      $region39: #{tpu_custom_call.1} parent=5 // pred_region
        // Predicated region
        $region41: #{tpu_custom_call.1} parent=39 // pred_check
          %p266 = pneg %p41
        $region42: #{tpu_custom_call.1} parent=39 // pred_check_branch
          %268 = sbr.rel (%p266) target = $region44
        $region43: #{tpu_custom_call.1} parent=39 // pred_region
          %s269 = sand.u32 %s31, 1
          %s270 = scalar_lea.sflag [#allocation3], %s269
          %s271 = sand.u32 %s31, 1
          %s272 = smul.addr %s271, 8
          %s273 = scalar_lea.vmem [#allocation2], %s272
          %s275 = ssub.s32 128, 128
          %276 = vsyncadd %s270, %s275
          %s277 = smul.addr %s21, 128
          %s278 = scalar_lea.hbm %s0, %s277
          %s280 = sshll.u32 %s273, 4
          %s281 = int_to_ptr.vmem [resolvable:$true] %s280
          %283 = dma.hbm_to_vmem [thread:$0]  %s278, 128, %s281, %s270
        $region44: #{tpu_custom_call.1} parent=39 // pred_fallthru
          _
      $region40: #{tpu_custom_call.1} parent=5 // pred_fallthru
        _
      %p284 = scmp.le.s32.totalorder 1, %s21
      %p285 = scmp.lt.s32.totalorder %s21, 3
      %p286 = pnand %p284, %p285
      %p287 = pneg %p286
      // Predicated region
      $region45: #{tpu_custom_call.1} parent=5 // pred_check
        _
      $region46: #{tpu_custom_call.1} parent=5 // pred_check_branch
        %289 = sbr.rel (%p286) target = $region48
      $region47: #{tpu_custom_call.1} parent=5 // pred_region
        %s290 = ssub.s32 %s21, 1
        %s291 = sand.u32 %s34, 1
        %s292 = scalar_lea.sflag [#allocation3], %s291
        %s293 = sand.u32 %s34, 1
        %s294 = smul.addr %s293, 8
        %s295 = scalar_lea.vmem [#allocation2], %s294
        // Predicated region
        $region49: #{tpu_custom_call.1} parent=47 // pred_check
          %p296 = pneg %p47
        $region50: #{tpu_custom_call.1} parent=47 // pred_check_branch
          %298 = sbr.rel (%p296) target = $region52
        $region51: #{tpu_custom_call.1} parent=47 // pred_region
          %299 = dma.done %s292, 128
        $region52: #{tpu_custom_call.1} parent=47 // pred_fallthru
          _
        // Predicated region
        $region53: #{tpu_custom_call.1} parent=47 // pred_check
          %p300 = pneg %p68
        $region54: #{tpu_custom_call.1} parent=47 // pred_check_branch
          %302 = sbr.rel (%p300) target = $region56
        $region55: #{tpu_custom_call.1} parent=47 // pred_region
          %303 = dma.done [#allocation6], 512
        $region56: #{tpu_custom_call.1} parent=47 // pred_fallthru
          _
        // Predicated region
        $region57: #{tpu_custom_call.1} parent=47 // pred_check
          %p304 = pneg %p110
        $region58: #{tpu_custom_call.1} parent=47 // pred_check_branch
          %306 = sbr.rel (%p304) target = $region60
        $region59: #{tpu_custom_call.1} parent=47 // pred_region
          %307 = dma.done [#allocation6], 1024
        $region60: #{tpu_custom_call.1} parent=47 // pred_fallthru
          _
        // Predicated region
        $region61: #{tpu_custom_call.1} parent=47 // pred_check
          %p308 = pneg %p152
        $region62: #{tpu_custom_call.1} parent=47 // pred_check_branch
          %310 = sbr.rel (%p308) target = $region64
        $region63: #{tpu_custom_call.1} parent=47 // pred_region
          %311 = dma.done [#allocation9], 1024
        $region64: #{tpu_custom_call.1} parent=47 // pred_fallthru
          _
        %s312 = sand.u32 %s34, 1
        %s313 = scalar_lea.sflag [#allocation3], %s312
        %s314 = sand.u32 %s34, 1
        %s315 = smul.addr %s314, 8
        %s316 = scalar_lea.vmem [#allocation2], %s315
        %p317 = pneg %p47
        %p318 = pneg %p44
        %p319 = pneg %p68
        %p320 = pneg %p65
        %p321 = pneg %p89
        %p322 = pneg %p86
        %p323 = pneg %p110
        %p324 = pneg %p107
        %p325 = pneg %p131
        %p326 = pneg %p128
        %p327 = pneg %p152
        %p328 = pneg %p149
        %p329 = pneg %p173
        %p330 = pneg %p170
        %p331 = pneg %p199
        %p332 = pneg %p196
        %s333 = sand.u32 %s186, 1
        %s334 = scalar_lea.sflag [#allocation4], %s333
        %s335 = sand.u32 %s186, 1
        %s336 = smul.addr %s335, 4
        %s337 = scalar_lea.vmem [#allocation10], %s336
        %v339 = vld [vmem:[%s295] sm:$0xff]
        %v340 = vpack.c.bf16 %v339, %v339
        %v341 = vld [vmem:[#allocation5] sm:$0xf]
        %v342 = vld [vmem:[#allocation5 + $0x4] sm:$0xf]
        %v343 = vld [vmem:[#allocation5 + $0x8] sm:$0xf]
        %v344 = vld [vmem:[#allocation5 + $0xc] sm:$0xf]
        %v345 = vld [vmem:[#allocation5 + $0x10] sm:$0xf]
        %v346 = vld [vmem:[#allocation5 + $0x14] sm:$0xf]
        %v347 = vld [vmem:[#allocation5 + $0x18] sm:$0xf]
        %v348 = vld [vmem:[#allocation5 + $0x1c] sm:$0xf]
        %v349 = vld [vmem:[%s2] sm:$0x1]
        %v351 = vlaneseq
        %v352 = vshrl.u32 %v351, 7
        %v353 = vsub.s32 0, %v352
        %v354 = vrot.slane %v349, %v353
        %v364 = vunpack.c.l.b16 %v341
        %v365 = vunpack.c.l.b16 %v342
        %v366 = vunpack.c.l.b16 %v343
        %v367 = vunpack.c.l.b16 %v344
        %v368 = vunpack.c.l.b16 %v345
        %v369 = vunpack.c.l.b16 %v346
        %v370 = vunpack.c.l.b16 %v347
        %v371 = vunpack.c.l.b16 %v348
        %v372 = vpack.c.b16 %v365, %v364
        %v373 = vpack.c.b16 %v367, %v366
        %v374 = vpack.c.b16 %v369, %v368
        %v375 = vpack.c.b16 %v371, %v370
        %vm380 = vcmask 523264
        %v382 = vsel %vm380, %v340, 0
        %384 = vmatprep.subr.bf16.mxu0 0
        %385 = vmatpush1.bf16.msra.mxu0 0
        %386 = vmatprep.subr.bf16.mxu0 0
        %387 = vmatpush1.bf16.msra.mxu0 0
        %388 = vmatprep.subr.bf16.mxu0 0
        %389 = vmatpush1.bf16.msra.mxu0 0
        %390 = vmatprep.subr.bf16.mxu0 0
        %391 = vmatpush1.bf16.msra.mxu0 0
        %392 = vmatprep.subr.bf16.mxu0 0
        %393 = vmatpush1.bf16.msra.mxu0 %v375
        %394 = vmatprep.subr.bf16.mxu0 0
        %395 = vmatpush1.bf16.msra.mxu0 %v374
        %396 = vmatprep.subr.bf16.mxu0 0
        %397 = vmatpush1.bf16.msra.mxu0 %v373
        %398 = vmatprep.subr.bf16.mxu0 0
        %399 = vmatpush1.bf16.msra.mxu0 %v372
        %400 = vmatprep.subr.bf16.mxu0 0
        %401 = vmatpush2.bf16.msra.mxu0 0
        %402 = vmatprep.subr.bf16.mxu0 0
        %403 = vmatpush2.bf16.msra.mxu0 0
        %404 = vmatprep.subr.bf16.mxu0 0
        %405 = vmatpush2.bf16.msra.mxu0 0
        %406 = vmatprep.subr.bf16.mxu0 0
        %407 = vmatpush2.bf16.msra.mxu0 0
        %408 = vmatprep.subr.bf16.mxu0 0
        %409 = vmatpush2.bf16.msra.mxu0 0
        %410 = vmatprep.subr.bf16.mxu0 0
        %411 = vmatpush2.bf16.msra.mxu0 0
        %412 = vmatprep.subr.bf16.mxu0 0
        %413 = vmatpush2.bf16.msra.mxu0 0
        %414 = vmatprep.subr.bf16.mxu0 0
        %415 = vmatpush2.bf16.msra.mxu0 0
        %416 = vmatprep.mubr.bf16.mxu0 0
        %417 = vmatmul.mubr.bf16.gmra.mxu0 %v382
        %v418 = vpop.f32.mrf.mxu0
        %v419 = vadd.f32 %v354, %v418
        %v420 = vpop.f32.mrf.mxu0
        %v421 = vpop.f32.mrf.mxu0
        %v422 = vpop.f32.mrf.mxu0
        %423 = vdwg.mxu0
        %v424 = vmax.f32 %v419, 0.0
        %v425 = vpack.c.bf16 %v424, %v424
        %v426 = vld [vmem:[#allocation7] sm:$0xf]
        %v427 = vld [vmem:[#allocation7 + $0x4] sm:$0xf]
        %v428 = vld [vmem:[#allocation7 + $0x8] sm:$0xf]
        %v429 = vld [vmem:[#allocation7 + $0xc] sm:$0xf]
        %v430 = vld [vmem:[#allocation7 + $0x10] sm:$0xf]
        %v431 = vld [vmem:[#allocation7 + $0x14] sm:$0xf]
        %v432 = vld [vmem:[#allocation7 + $0x18] sm:$0xf]
        %v433 = vld [vmem:[#allocation7 + $0x1c] sm:$0xf]
        %v434 = vld [vmem:[#allocation7 + $0x20] sm:$0xf]
        %v435 = vld [vmem:[#allocation7 + $0x24] sm:$0xf]
        %v436 = vld [vmem:[#allocation7 + $0x28] sm:$0xf]
        %v437 = vld [vmem:[#allocation7 + $0x2c] sm:$0xf]
        %v438 = vld [vmem:[#allocation7 + $0x30] sm:$0xf]
        %v439 = vld [vmem:[#allocation7 + $0x34] sm:$0xf]
        %v440 = vld [vmem:[#allocation7 + $0x38] sm:$0xf]
        %v441 = vld [vmem:[#allocation7 + $0x3c] sm:$0xf]
        %v442 = vld [vmem:[%s4] sm:$0x1]
        %v444 = vlaneseq
        %v445 = vshrl.u32 %v444, 7
        %v446 = vsub.s32 0, %v445
        %v447 = vrot.slane %v442, %v446
        %v465 = vunpack.c.l.b16 %v426
        %v466 = vunpack.c.l.b16 %v427
        %v467 = vunpack.c.l.b16 %v428
        %v468 = vunpack.c.l.b16 %v429
        %v469 = vunpack.c.l.b16 %v430
        %v470 = vunpack.c.l.b16 %v431
        %v471 = vunpack.c.l.b16 %v432
        %v472 = vunpack.c.l.b16 %v433
        %v473 = vunpack.c.l.b16 %v434
        %v474 = vunpack.c.l.b16 %v435
        %v475 = vunpack.c.l.b16 %v436
        %v476 = vunpack.c.l.b16 %v437
        %v477 = vunpack.c.l.b16 %v438
        %v478 = vunpack.c.l.b16 %v439
        %v479 = vunpack.c.l.b16 %v440
        %v480 = vunpack.c.l.b16 %v441
        %v481 = vpack.c.b16 %v466, %v465
        %v482 = vpack.c.b16 %v468, %v467
        %v483 = vpack.c.b16 %v470, %v469
        %v484 = vpack.c.b16 %v472, %v471
        %v485 = vpack.c.b16 %v474, %v473
        %v486 = vpack.c.b16 %v476, %v475
        %v487 = vpack.c.b16 %v478, %v477
        %v488 = vpack.c.b16 %v480, %v479
        %497 = vmatprep.subr.bf16.mxu0 0
        %498 = vmatpush1.bf16.msra.mxu0 %v488
        %499 = vmatprep.subr.bf16.mxu0 0
        %500 = vmatpush1.bf16.msra.mxu0 %v487
        %501 = vmatprep.subr.bf16.mxu0 0
        %502 = vmatpush1.bf16.msra.mxu0 %v486
        %503 = vmatprep.subr.bf16.mxu0 0
        %504 = vmatpush1.bf16.msra.mxu0 %v485
        %505 = vmatprep.subr.bf16.mxu0 0
        %506 = vmatpush1.bf16.msra.mxu0 %v484
        %507 = vmatprep.subr.bf16.mxu0 0
        %508 = vmatpush1.bf16.msra.mxu0 %v483
        %509 = vmatprep.subr.bf16.mxu0 0
        %510 = vmatpush1.bf16.msra.mxu0 %v482
        %511 = vmatprep.subr.bf16.mxu0 0
        %512 = vmatpush1.bf16.msra.mxu0 %v481
        %513 = vmatprep.subr.bf16.mxu0 0
        %514 = vmatpush2.bf16.msra.mxu0 0
        %515 = vmatprep.subr.bf16.mxu0 0
        %516 = vmatpush2.bf16.msra.mxu0 0
        %517 = vmatprep.subr.bf16.mxu0 0
        %518 = vmatpush2.bf16.msra.mxu0 0
        %519 = vmatprep.subr.bf16.mxu0 0
        %520 = vmatpush2.bf16.msra.mxu0 0
        %521 = vmatprep.subr.bf16.mxu0 0
        %522 = vmatpush2.bf16.msra.mxu0 0
        %523 = vmatprep.subr.bf16.mxu0 0
        %524 = vmatpush2.bf16.msra.mxu0 0
        %525 = vmatprep.subr.bf16.mxu0 0
        %526 = vmatpush2.bf16.msra.mxu0 0
        %527 = vmatprep.subr.bf16.mxu0 0
        %528 = vmatpush2.bf16.msra.mxu0 0
        %529 = vmatprep.mubr.bf16.mxu0 0
        %530 = vmatmul.mubr.bf16.gmra.mxu0 %v425
        %v531 = vpop.f32.mrf.mxu0
        %v532 = vadd.f32 %v447, %v531
        %v533 = vpop.f32.mrf.mxu0
        %v534 = vpop.f32.mrf.mxu0
        %v535 = vpop.f32.mrf.mxu0
        %536 = vdwg.mxu0
        %v537 = vmax.f32 %v532, 0.0
        %v538 = vpack.c.bf16 %v537, %v537
        %v539 = vld [vmem:[#allocation8] sm:$0xf]
        %v540 = vld [vmem:[#allocation8 + $0x4] sm:$0xf]
        %v541 = vld [vmem:[#allocation8 + $0x8] sm:$0xf]
        %v542 = vld [vmem:[#allocation8 + $0xc] sm:$0xf]
        %v543 = vld [vmem:[#allocation8 + $0x10] sm:$0xf]
        %v544 = vld [vmem:[#allocation8 + $0x14] sm:$0xf]
        %v545 = vld [vmem:[#allocation8 + $0x18] sm:$0xf]
        %v546 = vld [vmem:[#allocation8 + $0x1c] sm:$0xf]
        %v547 = vld [vmem:[#allocation8 + $0x20] sm:$0xf]
        %v548 = vld [vmem:[#allocation8 + $0x24] sm:$0xf]
        %v549 = vld [vmem:[#allocation8 + $0x28] sm:$0xf]
        %v550 = vld [vmem:[#allocation8 + $0x2c] sm:$0xf]
        %v551 = vld [vmem:[#allocation8 + $0x30] sm:$0xf]
        %v552 = vld [vmem:[#allocation8 + $0x34] sm:$0xf]
        %v553 = vld [vmem:[#allocation8 + $0x38] sm:$0xf]
        %v554 = vld [vmem:[#allocation8 + $0x3c] sm:$0xf]
        %v555 = vld [vmem:[%s6] sm:$0x1]
        %v557 = vlaneseq
        %v558 = vshrl.u32 %v557, 7
        %v559 = vsub.s32 0, %v558
        %v560 = vrot.slane %v555, %v559
        %v578 = vunpack.c.l.b16 %v539
        %v579 = vunpack.c.l.b16 %v540
        %v580 = vunpack.c.l.b16 %v541
        %v581 = vunpack.c.l.b16 %v542
        %v582 = vunpack.c.l.b16 %v543
        %v583 = vunpack.c.l.b16 %v544
        %v584 = vunpack.c.l.b16 %v545
        %v585 = vunpack.c.l.b16 %v546
        %v586 = vunpack.c.l.b16 %v547
        %v587 = vunpack.c.l.b16 %v548
        %v588 = vunpack.c.l.b16 %v549
        %v589 = vunpack.c.l.b16 %v550
        %v590 = vunpack.c.l.b16 %v551
        %v591 = vunpack.c.l.b16 %v552
        %v592 = vunpack.c.l.b16 %v553
        %v593 = vunpack.c.l.b16 %v554
        %v594 = vpack.c.b16 %v579, %v578
        %v595 = vpack.c.b16 %v581, %v580
        %v596 = vpack.c.b16 %v583, %v582
        %v597 = vpack.c.b16 %v585, %v584
        %v598 = vpack.c.b16 %v587, %v586
        %v599 = vpack.c.b16 %v589, %v588
        %v600 = vpack.c.b16 %v591, %v590
        %v601 = vpack.c.b16 %v593, %v592
        %610 = vmatprep.subr.bf16.mxu0 0
        %611 = vmatpush1.bf16.msra.mxu0 %v601
        %612 = vmatprep.subr.bf16.mxu0 0
        %613 = vmatpush1.bf16.msra.mxu0 %v600
        %614 = vmatprep.subr.bf16.mxu0 0
        %615 = vmatpush1.bf16.msra.mxu0 %v599
        %616 = vmatprep.subr.bf16.mxu0 0
        %617 = vmatpush1.bf16.msra.mxu0 %v598
        %618 = vmatprep.subr.bf16.mxu0 0
        %619 = vmatpush1.bf16.msra.mxu0 %v597
        %620 = vmatprep.subr.bf16.mxu0 0
        %621 = vmatpush1.bf16.msra.mxu0 %v596
        %622 = vmatprep.subr.bf16.mxu0 0
        %623 = vmatpush1.bf16.msra.mxu0 %v595
        %624 = vmatprep.subr.bf16.mxu0 0
        %625 = vmatpush1.bf16.msra.mxu0 %v594
        %626 = vmatprep.subr.bf16.mxu0 0
        %627 = vmatpush2.bf16.msra.mxu0 0
        %628 = vmatprep.subr.bf16.mxu0 0
        %629 = vmatpush2.bf16.msra.mxu0 0
        %630 = vmatprep.subr.bf16.mxu0 0
        %631 = vmatpush2.bf16.msra.mxu0 0
        %632 = vmatprep.subr.bf16.mxu0 0
        %633 = vmatpush2.bf16.msra.mxu0 0
        %634 = vmatprep.subr.bf16.mxu0 0
        %635 = vmatpush2.bf16.msra.mxu0 0
        %636 = vmatprep.subr.bf16.mxu0 0
        %637 = vmatpush2.bf16.msra.mxu0 0
        %638 = vmatprep.subr.bf16.mxu0 0
        %639 = vmatpush2.bf16.msra.mxu0 0
        %640 = vmatprep.subr.bf16.mxu0 0
        %641 = vmatpush2.bf16.msra.mxu0 0
        %642 = vmatprep.mubr.bf16.mxu0 0
        %643 = vmatmul.mubr.bf16.gmra.mxu0 %v538
        %v644 = vpop.f32.mrf.mxu0
        %v645 = vadd.f32 %v560, %v644
        %v646 = vpop.f32.mrf.mxu0
        %v647 = vpop.f32.mrf.mxu0
        %v648 = vpop.f32.mrf.mxu0
        %649 = vdwg.mxu0
        %650 = vmax.xlane.f32.xlu0 %v645
        %v651 = vpop.xlane.xlu0 %650
        %v652 = vsub.f32 %v645, %v651
        %v653 = vmul.f32 %v652, 1.442695
        %v654 = vpow.pop %v653
        %655 = vadd.xlane.f32.xlu0 %v654
        %v656 = vpop.xlane.xlu0 %655
        %v657 = vrcp.pop %v656
        %v658 = vmul.f32 %v654, %v657
        %v659 = vpack.c.bf16 %v658, %v658
        %660 = vst [vmem:[%s337] sm:$0xf] %v659
        %s661 = sand.u32 %s186, 1
        %s662 = scalar_lea.sflag [#allocation4], %s661
        %s663 = sand.u32 %s186, 1
        %s664 = smul.addr %s663, 4
        %s665 = scalar_lea.vmem [#allocation10], %s664
        // Predicated region
        $region65: #{tpu_custom_call.1} parent=47 // pred_check
          %p666 = pneg %p196
        $region66: #{tpu_custom_call.1} parent=47 // pred_check_branch
          %668 = sbr.rel (%p666) target = $region68
        $region67: #{tpu_custom_call.1} parent=47 // pred_region
          %s670 = ssub.s32 64, 64
          %671 = vsyncadd %s662, %s670
          %s672 = smul.addr %s26, 64
          %s673 = scalar_lea.hbm %s7, %s672
          %s675 = sshll.u32 %s665, 4
          %s676 = int_to_ptr.vmem [resolvable:$true] %s675
          %678 = dma.vmem_to_hbm [thread:$0]  %s676, 64, %s673, %s662
        $region68: #{tpu_custom_call.1} parent=47 // pred_fallthru
          _
      $region48: #{tpu_custom_call.1} parent=5 // pred_fallthru
        _
      %p679 = scmp.le.s32.totalorder 2, %s21
      // Predicated region
      $region69: #{tpu_custom_call.1} parent=5 // pred_check
        %p680 = pneg %p679
      $region70: #{tpu_custom_call.1} parent=5 // pred_check_branch
        %682 = sbr.rel (%p680) target = $region72
      $region71: #{tpu_custom_call.1} parent=5 // pred_region
        %s683 = ssub.s32 %s21, 2
        // Predicated region
        $region73: #{tpu_custom_call.1} parent=71 // pred_check
          %p684 = pneg %p202
        $region74: #{tpu_custom_call.1} parent=71 // pred_check_branch
          %686 = sbr.rel (%p684) target = $region76
        $region75: #{tpu_custom_call.1} parent=71 // pred_region
          %s687 = sand.u32 %s187, 1
          %s688 = scalar_lea.sflag [#allocation4], %s687
          %s689 = sand.u32 %s187, 1
          %s690 = smul.addr %s689, 4
          %s691 = scalar_lea.vmem [#allocation10], %s690
          %692 = dma.done %s688, 64
        $region76: #{tpu_custom_call.1} parent=71 // pred_fallthru
          _
      $region72: #{tpu_custom_call.1} parent=5 // pred_fallthru
        _
    $region6: #{tpu_custom_call.1} parent=1 // loop_footer
      %s25 = sadd.s32 1, %s21
    $region7: #{tpu_custom_call.1} parent=1 // loop_footer_branch
      %20 = sbr.rel target = $region3
    $region8: #{tpu_custom_call.1} parent=1 // loop_exit
      _
    %693 = vsyncpa [#allocation3], 1
    %s694 = scalar_lea.sflag [#allocation3], 1
    %695 = vsyncpa %s694, 1
    %696 = vsyncpa [#allocation6], 1
    %697 = vsyncpa [#allocation9], 1
    %698 = vsyncpa [#allocation4], 1
    %s699 = scalar_lea.sflag [#allocation4], 1
    %700 = vsyncpa %s699, 1

</llo_original>
